<compile_context>
chip_gen: v7x
topology: tpu7x:2x2x1
jax: 0.10.0
libtpu: 0.0.40
codegen_flags: <defaults>
</compile_context>

<pallas_src>
import math

import jax
import jax.numpy as jnp
from jax.experimental import pallas as pl
from jax.experimental.pallas import tpu as pltpu


# --------------------------------------------------------------------------
# Fused kernel: channel pool -> 3x3 conv (2->1) -> ReLU -> sigmoid -> scale
# --------------------------------------------------------------------------
def _make_spatial_attn_kernel(H, W, HW, HWp, nb, C):
    def kernel(x_ref, w_ref, b_ref, o_ref):
        # x_ref / o_ref : (nb, C, HWp) VMEM, input dtype, lane dim = HWp
        # w_ref         : (2, 9) SMEM f32, conv weights [max/mean chan, dy*3+dx]
        # b_ref         : (1, 1) SMEM f32, conv bias
        xv = x_ref[...]                                       # (nb, C, HWp)

        # --- ChannelPool: max & mean over channels (sublane reduction) ---
        mx = jnp.max(xv, axis=1).astype(jnp.float32)          # (nb, HWp)
        mn = jnp.mean(xv, axis=1, dtype=jnp.float32)          # (nb, HWp)
        cm = jnp.concatenate([mx, mn], axis=0)                # (2*nb, HWp)

        # --- boundary masks generated in-kernel (no HBM mask input) ---
        col = jax.lax.broadcasted_iota(jnp.int32, (1, HWp), 1)
        left_ok = (col % W != 0).astype(jnp.float32)          # ox = -1 valid
        right_ok = (col % W != (W - 1)).astype(jnp.float32)   # ox = +1 valid
        top_ok = (col >= W).astype(jnp.float32)               # oy = -1 valid
        bot_ok = (col < (HW - W)).astype(jnp.float32)         # oy = +1 valid

        def rot(a, s):
            # circular shift so the value at flat index p+s lands at position p
            return pltpu.roll(a, (-s) % HWp, axis=1)

        # Horizontal taps, column-masked once; the column mask is row-invariant
        # so it commutes with the row (+/-W) rolls below.
        base_l = rot(cm, -1) * left_ok                        # pixel (h, w-1)
        base_r = rot(cm, +1) * right_ok                       # pixel (h, w+1)
        bases = (base_l, cm, base_r)                          # ox = -1, 0, +1

        def row_taps(oy):
            acc = None
            for ix in range(3):                               # ox = -1, 0, +1
                k = (oy + 1) * 3 + ix                         # dy*3 + dx
                t = bases[ix] if oy == 0 else rot(bases[ix], oy * W)
                v = t[:nb] * w_ref[0, k] + t[nb:] * w_ref[1, k]   # (nb, HWp)
                acc = v if acc is None else acc + v
            return acc

        smap = (row_taps(0)
                + top_ok * row_taps(-1)
                + bot_ok * row_taps(1)
                + b_ref[0, 0])                                # (nb, HWp) f32
        gate = jax.nn.sigmoid(jnp.maximum(smap, 0.0))         # ReLU then sigmoid

        # --- scale: dominant O(C*HW) multiply stays in the input dtype ---
        o_ref[...] = (xv * gate[:, None, :].astype(xv.dtype)).astype(o_ref.dtype)

    return kernel


# --------------------------------------------------------------------------
# Wrapper
# --------------------------------------------------------------------------
def spatial_attn_layer(x, w, b):
    """x: (N, C, H, W); w: (2, 9) conv weights [max/mean chan, dy*3+dx]; b: (1, 1)."""
    N, C, H, W = x.shape
    HW = H * W
    HWp = -(-HW // 128) * 128                 # lane-dense padded spatial dim

    x_flat = x.reshape(N, C, HW)
    if HWp != HW:
        x_flat = jnp.pad(x_flat, ((0, 0), (0, 0), (0, HWp - HW)))

    # Images per grid step: fatten blocks to amortize per-step overhead, but
    # keep >= 2 parallel grid steps when N >= 2 (both v7x TensorCores busy).
    elt = x.dtype.itemsize
    per_img = C * HWp * elt
    nb = max(1, min(N, (2 * 1024 * 1024) // max(per_img, 1)))
    if N >= 2:
        nb = max(1, min(nb, N // 2))
    while N % nb:
        nb -= 1

    cost = pl.CostEstimate(
        flops=2 * N * C * HWp + 40 * N * HWp,
        transcendentals=N * HWp,
        bytes_accessed=2 * N * C * HWp * elt + (w.size + b.size) * 4,
    )

    out = pl.pallas_call(
        _make_spatial_attn_kernel(H, W, HW, HWp, nb, C),
        out_shape=jax.ShapeDtypeStruct((N, C, HWp), x.dtype),
        grid=(N // nb,),
        in_specs=[
            pl.BlockSpec((nb, C, HWp), lambda n: (n, 0, 0)),           # x
            pl.BlockSpec(memory_space=pltpu.MemorySpace.SMEM),         # weights
            pl.BlockSpec(memory_space=pltpu.MemorySpace.SMEM),         # bias
        ],
        out_specs=pl.BlockSpec((nb, C, HWp), lambda n: (n, 0, 0)),
        compiler_params=pltpu.CompilerParams(
            dimension_semantics=("parallel",)),
        cost_estimate=cost,
    )(x_flat, w.astype(jnp.float32), b.astype(jnp.float32))

    if HWp != HW:
        out = out[..., :HW]
    return out.reshape(N, C, H, W)


# --------------------------------------------------------------------------
# Pure-JAX reference (for validation)
# --------------------------------------------------------------------------
def _reference(x, w, b):
    mx = jnp.max(x, axis=1, keepdims=True)
    mn = jnp.mean(x, axis=1, keepdims=True)
    comp = jnp.concatenate([mx, mn], axis=1)                  # (N, 2, H, W)
    w_oihw = w.reshape(2, 3, 3)[None]                         # (1, 2, 3, 3)
    smap = jax.lax.conv_general_dilated(
        comp, w_oihw, window_strides=(1, 1), padding="SAME",
        dimension_numbers=("NCHW", "OIHW", "NCHW"))
    smap = smap + b.reshape(1, 1, 1, 1)
    gate = jax.nn.sigmoid(jnp.maximum(smap, 0.0))
    return x * gate


# --------------------------------------------------------------------------
if __name__ == "__main__":
    N, C, H, W = 2, 16, 16, 16

    key = jax.random.PRNGKey(0)
    kx, kw, kb = jax.random.split(key, 3)
    x = jax.random.normal(kx, (N, C, H, W), jnp.float32)

    # PyTorch Conv2d(2, 1, 3) default init bounds: U(-1/sqrt(fan_in), +)
    fan_in = 2 * 3 * 3
    bound = 1.0 / math.sqrt(fan_in)
    w = jax.random.uniform(kw, (2, 9), jnp.float32, -bound, bound)
    b = jax.random.uniform(kb, (1, 1), jnp.float32, -bound, bound)

    out = spatial_attn_layer(x, w, b)
    out = jax.block_until_ready(out)
    assert out.shape == (N, C, H, W)
    assert bool(jnp.all(jnp.isfinite(out)))

    ref = jax.block_until_ready(_reference(x, w, b))
    err = float(jnp.max(jnp.abs(out - ref)))
    assert err < 2e-5, f"max abs err {err}"

    print("KERNEL_OK")
</pallas_src>

<mosaic_0001>
module attributes {stable_mosaic.version = 11 : i64} {
  func.func @kernel(%arg0: i32, %arg1: memref<1x16x256xf32, #tpu.memory_space<vmem>>, %arg2: memref<2x9xf32, #tpu.memory_space<smem>>, %arg3: memref<1x1xf32, #tpu.memory_space<smem>>, %arg4: memref<1x16x256xf32, #tpu.memory_space<vmem>>) attributes {dimension_semantics = [#tpu.dimension_semantics<parallel>], iteration_bounds = array<i64: 2>, scalar_prefetch = 0 : i64, scratch_operands = 0 : i64, tpu.core_type = #tpu.core_type<tc>, window_params = [{transform_indices = @transform_0, window_bounds = array<i64: 1, 16, 256>}, {transform_indices = @transform_1, window_bounds = array<i64: 2, 9>}, {transform_indices = @transform_2, window_bounds = array<i64: 1, 1>}, {transform_indices = @transform_3, window_bounds = array<i64: 1, 16, 256>}]} {
    %c0 = arith.constant 0 : index
    %c0_0 = arith.constant 0 : index
    %c0_1 = arith.constant 0 : index
    %0 = vector.load %arg1[%c0, %c0_0, %c0_1] : memref<1x16x256xf32, #tpu.memory_space<vmem>>, vector<1x16x256xf32>
    %cst = arith.constant dense<0xFF800000> : vector<1x256xf32>
    %1 = vector.multi_reduction <maximumf>, %0, %cst [1] : vector<1x16x256xf32> to vector<1x256xf32>
    %cst_2 = arith.constant dense<0.000000e+00> : vector<1x256xf32>
    %2 = vector.multi_reduction <add>, %0, %cst_2 [1] : vector<1x16x256xf32> to vector<1x256xf32>
    %cst_3 = arith.constant 1.600000e+01 : f32
    %3 = vector.broadcast %cst_3 : f32 to vector<1x256xf32>
    %4 = arith.divf %2, %3 : vector<1x256xf32>
    %5 = tpu.concatenate %1, %4 in 0 : vector<1x256xf32>, vector<1x256xf32> -> vector<2x256xf32>
    %6 = tpu.iota {dimensions = array<i32: 1>} : vector<1x256xi32>
    %c16_i32 = arith.constant 16 : i32
    %c0_i32 = arith.constant 0 : i32
    %7 = arith.cmpi eq, %c16_i32, %c0_i32 : i32
    %c1_i32 = arith.constant 1 : i32
    %8 = arith.select %7, %c1_i32, %c16_i32 : i32
    %9 = vector.broadcast %8 : i32 to vector<1x256xi32>
    %10 = arith.remsi %6, %9 : vector<1x256xi32>
    %c0_i32_4 = arith.constant 0 : i32
    %11 = vector.broadcast %c0_i32_4 : i32 to vector<1x256xi32>
    %12 = arith.cmpi ne, %10, %11 : vector<1x256xi32>
    %c0_i32_5 = arith.constant 0 : i32
    %13 = vector.broadcast %c0_i32_5 : i32 to vector<1x256xi32>
    %14 = arith.cmpi slt, %10, %13 : vector<1x256xi32>
    %c0_i32_6 = arith.constant 0 : i32
    %15 = arith.cmpi slt, %8, %c0_i32_6 : i32
    %16 = vector.broadcast %15 : i1 to vector<1x256xi1>
    %17 = vector.broadcast %16 : vector<1x256xi1> to vector<1x256xi1>
    %18 = arith.xori %14, %17 : vector<1x256xi1>
    %19 = arith.andi %18, %12 : vector<1x256xi1>
    %20 = vector.broadcast %8 : i32 to vector<1x256xi32>
    %21 = arith.addi %10, %20 : vector<1x256xi32>
    %22 = arith.select %19, %21, %10 : vector<1x256xi1>, vector<1x256xi32>
    %c0_i32_7 = arith.constant 0 : i32
    %23 = vector.broadcast %c0_i32_7 : i32 to vector<1x256xi32>
    %24 = arith.cmpi ne, %22, %23 : vector<1x256xi32>
    %25 = arith.extui %24 : vector<1x256xi1> to vector<1x256xi32>
    %26 = arith.sitofp %25 : vector<1x256xi32> to vector<1x256xf32>
    %c16_i32_8 = arith.constant 16 : i32
    %c0_i32_9 = arith.constant 0 : i32
    %27 = arith.cmpi eq, %c16_i32_8, %c0_i32_9 : i32
    %c1_i32_10 = arith.constant 1 : i32
    %28 = arith.select %27, %c1_i32_10, %c16_i32_8 : i32
    %29 = vector.broadcast %28 : i32 to vector<1x256xi32>
    %30 = arith.remsi %6, %29 : vector<1x256xi32>
    %c0_i32_11 = arith.constant 0 : i32
    %31 = vector.broadcast %c0_i32_11 : i32 to vector<1x256xi32>
    %32 = arith.cmpi ne, %30, %31 : vector<1x256xi32>
    %c0_i32_12 = arith.constant 0 : i32
    %33 = vector.broadcast %c0_i32_12 : i32 to vector<1x256xi32>
    %34 = arith.cmpi slt, %30, %33 : vector<1x256xi32>
    %c0_i32_13 = arith.constant 0 : i32
    %35 = arith.cmpi slt, %28, %c0_i32_13 : i32
    %36 = vector.broadcast %35 : i1 to vector<1x256xi1>
    %37 = vector.broadcast %36 : vector<1x256xi1> to vector<1x256xi1>
    %38 = arith.xori %34, %37 : vector<1x256xi1>
    %39 = arith.andi %38, %32 : vector<1x256xi1>
    %40 = vector.broadcast %28 : i32 to vector<1x256xi32>
    %41 = arith.addi %30, %40 : vector<1x256xi32>
    %42 = arith.select %39, %41, %30 : vector<1x256xi1>, vector<1x256xi32>
    %c15_i32 = arith.constant 15 : i32
    %43 = vector.broadcast %c15_i32 : i32 to vector<1x256xi32>
    %44 = arith.cmpi ne, %42, %43 : vector<1x256xi32>
    %45 = arith.extui %44 : vector<1x256xi1> to vector<1x256xi32>
    %46 = arith.sitofp %45 : vector<1x256xi32> to vector<1x256xf32>
    %c16_i32_14 = arith.constant 16 : i32
    %47 = vector.broadcast %c16_i32_14 : i32 to vector<1x256xi32>
    %48 = arith.cmpi sge, %6, %47 : vector<1x256xi32>
    %49 = arith.extui %48 : vector<1x256xi1> to vector<1x256xi32>
    %50 = arith.sitofp %49 : vector<1x256xi32> to vector<1x256xf32>
    %c240_i32 = arith.constant 240 : i32
    %51 = vector.broadcast %c240_i32 : i32 to vector<1x256xi32>
    %52 = arith.cmpi slt, %6, %51 : vector<1x256xi32>
    %53 = arith.extui %52 : vector<1x256xi1> to vector<1x256xi32>
    %54 = arith.sitofp %53 : vector<1x256xi32> to vector<1x256xf32>
    %c1_i32_15 = arith.constant 1 : i32
    %55 = tpu.dynamic_rotate %5 by %c1_i32_15 dim 1 : vector<2x256xf32>, i32 -> vector<2x256xf32>
    %56 = vector.broadcast %26 : vector<1x256xf32> to vector<2x256xf32>
    %57 = arith.mulf %55, %56 : vector<2x256xf32>
    %c255_i32 = arith.constant 255 : i32
    %58 = tpu.dynamic_rotate %5 by %c255_i32 dim 1 : vector<2x256xf32>, i32 -> vector<2x256xf32>
    %59 = vector.broadcast %46 : vector<1x256xf32> to vector<2x256xf32>
    %60 = arith.mulf %58, %59 : vector<2x256xf32>
    %61 = vector.extract_strided_slice %57 {offsets = [0, 0], sizes = [1, 256], strides = [1, 1]} : vector<2x256xf32> to vector<1x256xf32>
    %c0_16 = arith.constant 0 : index
    %c3 = arith.constant 3 : index
    %62 = memref.load %arg2[%c0_16, %c3] : memref<2x9xf32, #tpu.memory_space<smem>>
    %63 = vector.broadcast %62 : f32 to vector<1x256xf32>
    %64 = arith.mulf %61, %63 : vector<1x256xf32>
    %65 = vector.extract_strided_slice %57 {offsets = [1, 0], sizes = [1, 256], strides = [1, 1]} : vector<2x256xf32> to vector<1x256xf32>
    %c1 = arith.constant 1 : index
    %c3_17 = arith.constant 3 : index
    %66 = memref.load %arg2[%c1, %c3_17] : memref<2x9xf32, #tpu.memory_space<smem>>
    %67 = vector.broadcast %66 : f32 to vector<1x256xf32>
    %68 = arith.mulf %65, %67 : vector<1x256xf32>
    %69 = arith.addf %64, %68 : vector<1x256xf32>
    %70 = vector.extract_strided_slice %5 {offsets = [0, 0], sizes = [1, 256], strides = [1, 1]} : vector<2x256xf32> to vector<1x256xf32>
    %c0_18 = arith.constant 0 : index
    %c4 = arith.constant 4 : index
    %71 = memref.load %arg2[%c0_18, %c4] : memref<2x9xf32, #tpu.memory_space<smem>>
    %72 = vector.broadcast %71 : f32 to vector<1x256xf32>
    %73 = arith.mulf %70, %72 : vector<1x256xf32>
    %74 = vector.extract_strided_slice %5 {offsets = [1, 0], sizes = [1, 256], strides = [1, 1]} : vector<2x256xf32> to vector<1x256xf32>
    %c1_19 = arith.constant 1 : index
    %c4_20 = arith.constant 4 : index
    %75 = memref.load %arg2[%c1_19, %c4_20] : memref<2x9xf32, #tpu.memory_space<smem>>
    %76 = vector.broadcast %75 : f32 to vector<1x256xf32>
    %77 = arith.mulf %74, %76 : vector<1x256xf32>
    %78 = arith.addf %73, %77 : vector<1x256xf32>
    %79 = arith.addf %69, %78 : vector<1x256xf32>
    %80 = vector.extract_strided_slice %60 {offsets = [0, 0], sizes = [1, 256], strides = [1, 1]} : vector<2x256xf32> to vector<1x256xf32>
    %c0_21 = arith.constant 0 : index
    %c5 = arith.constant 5 : index
    %81 = memref.load %arg2[%c0_21, %c5] : memref<2x9xf32, #tpu.memory_space<smem>>
    %82 = vector.broadcast %81 : f32 to vector<1x256xf32>
    %83 = arith.mulf %80, %82 : vector<1x256xf32>
    %84 = vector.extract_strided_slice %60 {offsets = [1, 0], sizes = [1, 256], strides = [1, 1]} : vector<2x256xf32> to vector<1x256xf32>
    %c1_22 = arith.constant 1 : index
    %c5_23 = arith.constant 5 : index
    %85 = memref.load %arg2[%c1_22, %c5_23] : memref<2x9xf32, #tpu.memory_space<smem>>
    %86 = vector.broadcast %85 : f32 to vector<1x256xf32>
    %87 = arith.mulf %84, %86 : vector<1x256xf32>
    %88 = arith.addf %83, %87 : vector<1x256xf32>
    %89 = arith.addf %79, %88 : vector<1x256xf32>
    %c16_i32_24 = arith.constant 16 : i32
    %90 = tpu.dynamic_rotate %57 by %c16_i32_24 dim 1 : vector<2x256xf32>, i32 -> vector<2x256xf32>
    %91 = vector.extract_strided_slice %90 {offsets = [0, 0], sizes = [1, 256], strides = [1, 1]} : vector<2x256xf32> to vector<1x256xf32>
    %c0_25 = arith.constant 0 : index
    %c0_26 = arith.constant 0 : index
    %92 = memref.load %arg2[%c0_25, %c0_26] : memref<2x9xf32, #tpu.memory_space<smem>>
    %93 = vector.broadcast %92 : f32 to vector<1x256xf32>
    %94 = arith.mulf %91, %93 : vector<1x256xf32>
    %95 = vector.extract_strided_slice %90 {offsets = [1, 0], sizes = [1, 256], strides = [1, 1]} : vector<2x256xf32> to vector<1x256xf32>
    %c1_27 = arith.constant 1 : index
    %c0_28 = arith.constant 0 : index
    %96 = memref.load %arg2[%c1_27, %c0_28] : memref<2x9xf32, #tpu.memory_space<smem>>
    %97 = vector.broadcast %96 : f32 to vector<1x256xf32>
    %98 = arith.mulf %95, %97 : vector<1x256xf32>
    %99 = arith.addf %94, %98 : vector<1x256xf32>
    %c16_i32_29 = arith.constant 16 : i32
    %100 = tpu.dynamic_rotate %5 by %c16_i32_29 dim 1 : vector<2x256xf32>, i32 -> vector<2x256xf32>
    %101 = vector.extract_strided_slice %100 {offsets = [0, 0], sizes = [1, 256], strides = [1, 1]} : vector<2x256xf32> to vector<1x256xf32>
    %c0_30 = arith.constant 0 : index
    %c1_31 = arith.constant 1 : index
    %102 = memref.load %arg2[%c0_30, %c1_31] : memref<2x9xf32, #tpu.memory_space<smem>>
    %103 = vector.broadcast %102 : f32 to vector<1x256xf32>
    %104 = arith.mulf %101, %103 : vector<1x256xf32>
    %105 = vector.extract_strided_slice %100 {offsets = [1, 0], sizes = [1, 256], strides = [1, 1]} : vector<2x256xf32> to vector<1x256xf32>
    %c1_32 = arith.constant 1 : index
    %c1_33 = arith.constant 1 : index
    %106 = memref.load %arg2[%c1_32, %c1_33] : memref<2x9xf32, #tpu.memory_space<smem>>
    %107 = vector.broadcast %106 : f32 to vector<1x256xf32>
    %108 = arith.mulf %105, %107 : vector<1x256xf32>
    %109 = arith.addf %104, %108 : vector<1x256xf32>
    %110 = arith.addf %99, %109 : vector<1x256xf32>
    %c16_i32_34 = arith.constant 16 : i32
    %111 = tpu.dynamic_rotate %60 by %c16_i32_34 dim 1 : vector<2x256xf32>, i32 -> vector<2x256xf32>
    %112 = vector.extract_strided_slice %111 {offsets = [0, 0], sizes = [1, 256], strides = [1, 1]} : vector<2x256xf32> to vector<1x256xf32>
    %c0_35 = arith.constant 0 : index
    %c2 = arith.constant 2 : index
    %113 = memref.load %arg2[%c0_35, %c2] : memref<2x9xf32, #tpu.memory_space<smem>>
    %114 = vector.broadcast %113 : f32 to vector<1x256xf32>
    %115 = arith.mulf %112, %114 : vector<1x256xf32>
    %116 = vector.extract_strided_slice %111 {offsets = [1, 0], sizes = [1, 256], strides = [1, 1]} : vector<2x256xf32> to vector<1x256xf32>
    %c1_36 = arith.constant 1 : index
    %c2_37 = arith.constant 2 : index
    %117 = memref.load %arg2[%c1_36, %c2_37] : memref<2x9xf32, #tpu.memory_space<smem>>
    %118 = vector.broadcast %117 : f32 to vector<1x256xf32>
    %119 = arith.mulf %116, %118 : vector<1x256xf32>
    %120 = arith.addf %115, %119 : vector<1x256xf32>
    %121 = arith.addf %110, %120 : vector<1x256xf32>
    %122 = arith.mulf %50, %121 : vector<1x256xf32>
    %123 = arith.addf %89, %122 : vector<1x256xf32>
    %c240_i32_38 = arith.constant 240 : i32
    %124 = tpu.dynamic_rotate %57 by %c240_i32_38 dim 1 : vector<2x256xf32>, i32 -> vector<2x256xf32>
    %125 = vector.extract_strided_slice %124 {offsets = [0, 0], sizes = [1, 256], strides = [1, 1]} : vector<2x256xf32> to vector<1x256xf32>
    %c0_39 = arith.constant 0 : index
    %c6 = arith.constant 6 : index
    %126 = memref.load %arg2[%c0_39, %c6] : memref<2x9xf32, #tpu.memory_space<smem>>
    %127 = vector.broadcast %126 : f32 to vector<1x256xf32>
    %128 = arith.mulf %125, %127 : vector<1x256xf32>
    %129 = vector.extract_strided_slice %124 {offsets = [1, 0], sizes = [1, 256], strides = [1, 1]} : vector<2x256xf32> to vector<1x256xf32>
    %c1_40 = arith.constant 1 : index
    %c6_41 = arith.constant 6 : index
    %130 = memref.load %arg2[%c1_40, %c6_41] : memref<2x9xf32, #tpu.memory_space<smem>>
    %131 = vector.broadcast %130 : f32 to vector<1x256xf32>
    %132 = arith.mulf %129, %131 : vector<1x256xf32>
    %133 = arith.addf %128, %132 : vector<1x256xf32>
    %c240_i32_42 = arith.constant 240 : i32
    %134 = tpu.dynamic_rotate %5 by %c240_i32_42 dim 1 : vector<2x256xf32>, i32 -> vector<2x256xf32>
    %135 = vector.extract_strided_slice %134 {offsets = [0, 0], sizes = [1, 256], strides = [1, 1]} : vector<2x256xf32> to vector<1x256xf32>
    %c0_43 = arith.constant 0 : index
    %c7 = arith.constant 7 : index
    %136 = memref.load %arg2[%c0_43, %c7] : memref<2x9xf32, #tpu.memory_space<smem>>
    %137 = vector.broadcast %136 : f32 to vector<1x256xf32>
    %138 = arith.mulf %135, %137 : vector<1x256xf32>
    %139 = vector.extract_strided_slice %134 {offsets = [1, 0], sizes = [1, 256], strides = [1, 1]} : vector<2x256xf32> to vector<1x256xf32>
    %c1_44 = arith.constant 1 : index
    %c7_45 = arith.constant 7 : index
    %140 = memref.load %arg2[%c1_44, %c7_45] : memref<2x9xf32, #tpu.memory_space<smem>>
    %141 = vector.broadcast %140 : f32 to vector<1x256xf32>
    %142 = arith.mulf %139, %141 : vector<1x256xf32>
    %143 = arith.addf %138, %142 : vector<1x256xf32>
    %144 = arith.addf %133, %143 : vector<1x256xf32>
    %c240_i32_46 = arith.constant 240 : i32
    %145 = tpu.dynamic_rotate %60 by %c240_i32_46 dim 1 : vector<2x256xf32>, i32 -> vector<2x256xf32>
    %146 = vector.extract_strided_slice %145 {offsets = [0, 0], sizes = [1, 256], strides = [1, 1]} : vector<2x256xf32> to vector<1x256xf32>
    %c0_47 = arith.constant 0 : index
    %c8 = arith.constant 8 : index
    %147 = memref.load %arg2[%c0_47, %c8] : memref<2x9xf32, #tpu.memory_space<smem>>
    %148 = vector.broadcast %147 : f32 to vector<1x256xf32>
    %149 = arith.mulf %146, %148 : vector<1x256xf32>
    %150 = vector.extract_strided_slice %145 {offsets = [1, 0], sizes = [1, 256], strides = [1, 1]} : vector<2x256xf32> to vector<1x256xf32>
    %c1_48 = arith.constant 1 : index
    %c8_49 = arith.constant 8 : index
    %151 = memref.load %arg2[%c1_48, %c8_49] : memref<2x9xf32, #tpu.memory_space<smem>>
    %152 = vector.broadcast %151 : f32 to vector<1x256xf32>
    %153 = arith.mulf %150, %152 : vector<1x256xf32>
    %154 = arith.addf %149, %153 : vector<1x256xf32>
    %155 = arith.addf %144, %154 : vector<1x256xf32>
    %156 = arith.mulf %54, %155 : vector<1x256xf32>
    %157 = arith.addf %123, %156 : vector<1x256xf32>
    %c0_50 = arith.constant 0 : index
    %c0_51 = arith.constant 0 : index
    %158 = memref.load %arg3[%c0_50, %c0_51] : memref<1x1xf32, #tpu.memory_space<smem>>
    %159 = vector.broadcast %158 : f32 to vector<1x256xf32>
    %160 = arith.addf %157, %159 : vector<1x256xf32>
    %cst_52 = arith.constant 0.000000e+00 : f32
    %161 = vector.broadcast %cst_52 : f32 to vector<1x256xf32>
    %162 = arith.maximumf %160, %161 : vector<1x256xf32>
    %163 = arith.negf %162 : vector<1x256xf32>
    %164 = math.exp %163 : vector<1x256xf32>
    %cst_53 = arith.constant 1.000000e+00 : f32
    %165 = vector.broadcast %cst_53 : f32 to vector<1x256xf32>
    %166 = arith.addf %165, %164 : vector<1x256xf32>
    %167 = arith.divf %165, %166 : vector<1x256xf32>
    %168 = vector.shape_cast %167 : vector<1x256xf32> to vector<1x1x256xf32>
    %169 = vector.broadcast %168 : vector<1x1x256xf32> to vector<1x16x256xf32>
    %170 = arith.mulf %0, %169 : vector<1x16x256xf32>
    %c0_54 = arith.constant 0 : index
    %c0_55 = arith.constant 0 : index
    %c0_56 = arith.constant 0 : index
    %171 = vector.load %arg4[%c0_54, %c0_55, %c0_56] : memref<1x16x256xf32, #tpu.memory_space<vmem>>, vector<1x16x256xf32>
    tpu.vector_store %arg4[%c0_54, %c0_55, %c0_56], %170 {strides = array<i32>} : memref<1x16x256xf32, #tpu.memory_space<vmem>>, vector<1x16x256xf32>,
    return
  }
  func.func @transform_0(%arg0: i32) -> (i32, i32, i32) {
    %c0_i32 = arith.constant 0 : i32
    %c0_i32_0 = arith.constant 0 : i32
    %c0_i32_1 = arith.constant 0 : i32
    return %arg0, %c0_i32, %c0_i32_0 : i32, i32, i32
  }
  func.func @transform_1(%arg0: i32) -> (i32, i32) {
    %c0_i32 = arith.constant 0 : i32
    %c0_i32_0 = arith.constant 0 : i32
    %c0_i32_1 = arith.constant 0 : i32
    return %c0_i32, %c0_i32_0 : i32, i32
  }
  func.func @transform_2(%arg0: i32) -> (i32, i32) {
    %c0_i32 = arith.constant 0 : i32
    %c0_i32_0 = arith.constant 0 : i32
    %c0_i32_1 = arith.constant 0 : i32
    return %c0_i32, %c0_i32_0 : i32, i32
  }
  func.func @transform_3(%arg0: i32) -> (i32, i32, i32) {
    %c0_i32 = arith.constant 0 : i32
    %c0_i32_0 = arith.constant 0 : i32
    %c0_i32_1 = arith.constant 0 : i32
    return %arg0, %c0_i32, %c0_i32_0 : i32, i32, i32
  }
}

</mosaic_0001>

<llo_original>
// kernel: tpu_custom_call.1
$region0: #{tpu_custom_call.1}
  #allocation0 [shape = 'u32[]', space=smem, size = 0x4, offset = 0x4, fixed_abs, tag = 'smem constant byte address 0x4 - core index']
  #allocation1 [shape = 'u32[144,128]{1,0:T(1,128)}', space=vmem, size = 0x12000, scoped, tag = 'internal scratch']
  #allocation2 [shape = 'f32[1,1]{1,0:T(1,128)S(6)}', space=smem, size = 0x200, scoped, tag = 'scoped memory for tpu_custom_call.1']
  %s0 = inlined_call_operand.hbm [shape: f32[2,16,256], index: 0, kind: input, shape index: {}]
  %s1 = inlined_call_operand.vmem [shape: f32[2,9], index: 1, kind: input, shape index: {}]
  %s2 = inlined_call_operand.<no memory space> [shape: f32[1,1], index: 2, kind: input, shape index: {}]
  %s3 = inlined_call_operand.hbm [shape: f32[2,16,256], index: 3, kind: output, shape index: {}]
  %s4 = sld [smem:[#allocation0]]
  $region53: #{tpu_custom_call.1} parent=0
    _
  %s6 = ssub.s32 1, %s4
  %s7 = scalar_select 0, %s6, %s4
  %8 = sst [smem:[#allocation2]] %s2
  $region1: #{tpu_custom_call.1} parent=0
    #allocation3 [shape = 'u8[32768]{0}', space=vmem, size = 0x8000, scoped, tag = 'input window, operand 0']
    #allocation4 [shape = 's32[2]{0}', space=sflag, size = 0x8, scoped, tag = 'scoped memory for tpu_custom_call.1']
    #allocation5 [shape = 's32[2]{0}', space=sflag, size = 0x8, scoped, tag = 'scoped memory for tpu_custom_call.1']
    #allocation6 [shape = 's32[2]{0}', space=sflag, size = 0x8, scoped, tag = 'scoped memory for tpu_custom_call.1']
    #allocation7 [shape = 'u8[1024]{0}', space=smem, size = 0x400, scoped, tag = 'input window, operand 1, single buffered']
    #allocation8 [shape = 'u8[32768]{0}', space=vmem, size = 0x8000, scoped, tag = 'output window, operand 0']
    %9 = vsyncpa [#allocation4], 0
    %s10 = scalar_lea.sflag [#allocation4], 1
    %11 = vsyncpa %s10, 0
    %12 = vsyncpa [#allocation6], 0
    %13 = vsyncpa [#allocation5], 0
    %s14 = scalar_lea.sflag [#allocation5], 1
    %15 = vsyncpa %s14, 0
    loop: start=0, step=1, limit=4
    $region2: #{tpu_custom_call.1} parent=1 // loop_pre_header
      _
    $region3: #{tpu_custom_call.1} parent=1 // loop_header
      %s17 = sphi 0, %s21
      %p18 = scmp.ge.s32.totalorder %s17, 4
      %s27 = sphi 0, %s29
      %s30 = sphi 0, %s27
      %s31 = sphi 0, %s30
      %s47 = sphi 0, %s31
      %s51 = sphi 0, %s51
      %s53 = sphi 0, %s51
      %s54 = sphi 0, %s53
      %s68 = sphi 0, %s54
      %s72 = sphi 0, %s72
      %s74 = sphi 0, %s72
      %s75 = sphi 0, %s74
      %s89 = sphi 0, %s75
      %s95 = sphi 0, %s97
      %s98 = sphi 0, %s95
      %s99 = sphi 0, %s98
      %s115 = sphi 0, %s99
    $region4: #{tpu_custom_call.1} parent=1 // loop_header_branch
      %20 = sbr.rel (%p18) target = $region8
    $region5: #{tpu_custom_call.1} parent=1 // loop_body
      %s22 = ssub.s32 %s17, 1
      %s23 = ssub.s32 %s17, 2
      %s24 = sadd.s32 %s17, 1
      %s25 = ssub.s32 %s17, %s24
      %p26 = scmp.eq.s32.totalorder %s25, 0
      %s28 = sadd.s32 %s27, 1
      %s29 = scalar_select %p26, %s27, %s28
      %p32 = pneg %p26
      %p33 = scmp.eq.s32.totalorder %s17, 1
      %p34 = por %p32, %p33
      %p35 = scmp.ne.s32.totalorder %s27, %s30
      %p36 = scmp.eq.s32.totalorder %s17, 0
      %p37 = por %p35, %p36
      %p38 = scmp.ne.s32.totalorder %s27, %s30
      %p39 = scmp.eq.s32.totalorder %s22, 1
      %p40 = por %p38, %p39
      %p41 = scmp.ne.s32.totalorder %s30, %s31
      %p42 = scmp.eq.s32.totalorder %s22, 0
      %p43 = por %p41, %p42
      %p44 = scmp.ne.s32.totalorder %s30, %s31
      %p45 = scmp.eq.s32.totalorder %s23, 1
      %p46 = por %p44, %p45
      %p48 = scmp.ne.s32.totalorder %s31, %s47
      %p49 = scmp.eq.s32.totalorder %s23, 0
      %p50 = por %p48, %p49
      %s52 = sadd.s32 %s51, 1
      %p55 = scmp.eq.s32.totalorder %s17, 1
      %p56 = scmp.ne.s32.totalorder %s51, %s53
      %p57 = scmp.eq.s32.totalorder %s17, 0
      %p58 = por %p56, %p57
      %p59 = scmp.ne.s32.totalorder %s51, %s53
      %p60 = scmp.eq.s32.totalorder %s22, 1
      %p61 = por %p59, %p60
      %p62 = scmp.ne.s32.totalorder %s53, %s54
      %p63 = scmp.eq.s32.totalorder %s22, 0
      %p64 = por %p62, %p63
      %p65 = scmp.ne.s32.totalorder %s53, %s54
      %p66 = scmp.eq.s32.totalorder %s23, 1
      %p67 = por %p65, %p66
      %p69 = scmp.ne.s32.totalorder %s54, %s68
      %p70 = scmp.eq.s32.totalorder %s23, 0
      %p71 = por %p69, %p70
      %s73 = sadd.s32 %s72, 1
      %p76 = scmp.eq.s32.totalorder %s17, 1
      %p77 = scmp.ne.s32.totalorder %s72, %s74
      %p78 = scmp.eq.s32.totalorder %s17, 0
      %p79 = por %p77, %p78
      %p80 = scmp.ne.s32.totalorder %s72, %s74
      %p81 = scmp.eq.s32.totalorder %s22, 1
      %p82 = por %p80, %p81
      %p83 = scmp.ne.s32.totalorder %s74, %s75
      %p84 = scmp.eq.s32.totalorder %s22, 0
      %p85 = por %p83, %p84
      %p86 = scmp.ne.s32.totalorder %s74, %s75
      %p87 = scmp.eq.s32.totalorder %s23, 1
      %p88 = por %p86, %p87
      %p90 = scmp.ne.s32.totalorder %s75, %s89
      %p91 = scmp.eq.s32.totalorder %s23, 0
      %p92 = por %p90, %p91
      %s93 = ssub.s32 %s17, %s24
      %p94 = scmp.eq.s32.totalorder %s93, 0
      %s96 = sadd.s32 %s95, 1
      %s97 = scalar_select %p94, %s95, %s96
      %p100 = pneg %p94
      %p101 = scmp.eq.s32.totalorder %s17, 1
      %p102 = por %p100, %p101
      %p103 = scmp.ne.s32.totalorder %s95, %s98
      %p104 = scmp.eq.s32.totalorder %s17, 0
      %p105 = por %p103, %p104
      %p106 = scmp.ne.s32.totalorder %s95, %s98
      %p107 = scmp.eq.s32.totalorder %s22, 1
      %p108 = por %p106, %p107
      %p109 = scmp.ne.s32.totalorder %s98, %s99
      %p110 = scmp.eq.s32.totalorder %s22, 0
      %p111 = por %p109, %p110
      %p112 = scmp.ne.s32.totalorder %s98, %s99
      %p113 = scmp.eq.s32.totalorder %s23, 1
      %p114 = por %p112, %p113
      %p116 = scmp.ne.s32.totalorder %s99, %s115
      %p117 = scmp.eq.s32.totalorder %s23, 0
      %p118 = por %p116, %p117
      %p119 = scmp.le.s32.totalorder 1, %s17
      %p120 = scmp.lt.s32.totalorder %s17, 3
      %p121 = pnand %p119, %p120
      %p122 = pneg %p121
      // Predicated region
      $region9: #{tpu_custom_call.1} parent=5 // pred_check
        _
      $region10: #{tpu_custom_call.1} parent=5 // pred_check_branch
        %124 = sbr.rel (%p121) target = $region12
      $region11: #{tpu_custom_call.1} parent=5 // pred_region
        %s125 = ssub.s32 %s17, 1
        // Predicated region
        $region13: #{tpu_custom_call.1} parent=11 // pred_check
          %p126 = pneg %p64
        $region14: #{tpu_custom_call.1} parent=11 // pred_check_branch
          %128 = sbr.rel (%p126) target = $region16
        $region15: #{tpu_custom_call.1} parent=11 // pred_region
          %s130 = ssub.s32 32, 32
          %131 = vsyncadd [#allocation6], %s130
          %s133 = sshll.u32 %s1, 4
          %s134 = int_to_ptr.vmem [resolvable:$true] %s133
          %136 = dma.vmem_to_smem %s134, 32, [#allocation7], [#allocation6]
        $region16: #{tpu_custom_call.1} parent=11 // pred_fallthru
          _
        // Predicated region
        $region17: #{tpu_custom_call.1} parent=11 // pred_check
          %p137 = pneg %p85
        $region18: #{tpu_custom_call.1} parent=11 // pred_check_branch
          %139 = sbr.rel (%p137) target = $region20
        $region19: #{tpu_custom_call.1} parent=11 // pred_region
          _
        $region20: #{tpu_custom_call.1} parent=11 // pred_fallthru
          _
      $region12: #{tpu_custom_call.1} parent=5 // pred_fallthru
        _
      %p140 = scmp.lt.s32.totalorder %s17, 2
      // Predicated region
      $region21: #{tpu_custom_call.1} parent=5 // pred_check
        %p141 = pneg %p140
      $region22: #{tpu_custom_call.1} parent=5 // pred_check_branch
        %143 = sbr.rel (%p141) target = $region24
      $region23: #{tpu_custom_call.1} parent=5 // pred_region
        // Predicated region
        $region25: #{tpu_custom_call.1} parent=23 // pred_check
          %p144 = pneg %p37
        $region26: #{tpu_custom_call.1} parent=23 // pred_check_branch
          %146 = sbr.rel (%p144) target = $region28
        $region27: #{tpu_custom_call.1} parent=23 // pred_region
          %s147 = sand.u32 %s27, 1
          %s148 = scalar_lea.sflag [#allocation4], %s147
          %s149 = sand.u32 %s27, 1
          %s150 = smul.addr %s149, 32
          %s151 = scalar_lea.vmem [#allocation3], %s150
          %s153 = ssub.s32 512, 512
          %154 = vsyncadd %s148, %s153
          %s155 = smul.addr %s17, 4
          %s156 = smul.addr %s155, 128
          %s157 = scalar_lea.hbm %s0, %s156
          %s158 = sshll.u32 %s151, 4
          %s159 = int_to_ptr.vmem [resolvable:$true] %s158
          %164 = dma.hbm_to_vmem [thread:$0]  %s157, 512, %s159, %s148, 256, 256, 16
        $region28: #{tpu_custom_call.1} parent=23 // pred_fallthru
          _
      $region24: #{tpu_custom_call.1} parent=5 // pred_fallthru
        _
      %p165 = scmp.le.s32.totalorder 1, %s17
      %p166 = scmp.lt.s32.totalorder %s17, 3
      %p167 = pnand %p165, %p166
      %p168 = pneg %p167
      // Predicated region
      $region29: #{tpu_custom_call.1} parent=5 // pred_check
        _
      $region30: #{tpu_custom_call.1} parent=5 // pred_check_branch
        %170 = sbr.rel (%p167) target = $region32
      $region31: #{tpu_custom_call.1} parent=5 // pred_region
        %s171 = ssub.s32 %s17, 1
        %s172 = sand.u32 %s30, 1
        %s173 = scalar_lea.sflag [#allocation4], %s172
        %s174 = sand.u32 %s30, 1
        %s175 = smul.addr %s174, 32
        %s176 = scalar_lea.vmem [#allocation3], %s175
        // Predicated region
        $region33: #{tpu_custom_call.1} parent=31 // pred_check
          %p177 = pneg %p43
        $region34: #{tpu_custom_call.1} parent=31 // pred_check_branch
          %179 = sbr.rel (%p177) target = $region36
        $region35: #{tpu_custom_call.1} parent=31 // pred_region
          %180 = dma.done %s173, 512
        $region36: #{tpu_custom_call.1} parent=31 // pred_fallthru
          _
        // Predicated region
        $region37: #{tpu_custom_call.1} parent=31 // pred_check
          %p181 = pneg %p64
        $region38: #{tpu_custom_call.1} parent=31 // pred_check_branch
          %183 = sbr.rel (%p181) target = $region40
        $region39: #{tpu_custom_call.1} parent=31 // pred_region
          %184 = dma.done [#allocation6], 32
        $region40: #{tpu_custom_call.1} parent=31 // pred_fallthru
          _
        %185 = sfence
        %s186 = sand.u32 %s30, 1
        %s187 = scalar_lea.sflag [#allocation4], %s186
        %s188 = sand.u32 %s30, 1
        %s189 = smul.addr %s188, 32
        %s190 = scalar_lea.vmem [#allocation3], %s189
        %p191 = pneg %p43
        %p192 = pneg %p40
        %p193 = pneg %p64
        %p194 = pneg %p61
        %p195 = pneg %p85
        %p196 = pneg %p82
        %p197 = pneg %p111
        %p198 = pneg %p108
        %s199 = sand.u32 %s98, 1
        %s200 = scalar_lea.sflag [#allocation5], %s199
        %s201 = sand.u32 %s98, 1
        %s202 = smul.addr %s201, 32
        %s203 = scalar_lea.vmem [#allocation8], %s202
        %v204 = vld [vmem:[%s176] sm:$0xff]
        %v205 = vld [vmem:[%s176 + $0x8] sm:$0xff]
        %v206 = vld [vmem:[%s176 + $0x10] sm:$0xff]
        %v207 = vld [vmem:[%s176 + $0x18] sm:$0xff]
        %v208 = vmax.f32 %v204, %v206
        %v209 = vrot.slane %v208, 4
        %v210 = vmax.f32 %v208, %v209
        %v211 = vrot.slane %v210, 2
        %v212 = vmax.f32 %v210, %v211
        %v213 = vrot.slane %v212, 1
        %v214 = vmax.f32 %v212, %v213
        %v215 = vmax.f32 %v205, %v207
        %v216 = vrot.slane %v215, 4
        %v217 = vmax.f32 %v215, %v216
        %v218 = vrot.slane %v217, 2
        %v219 = vmax.f32 %v217, %v218
        %v220 = vrot.slane %v219, 1
        %v221 = vmax.f32 %v219, %v220
        %v222 = vadd.f32 %v204, %v206
        %v223 = vrot.slane %v222, 4
        %v224 = vadd.f32 %v222, %v223
        %v225 = vrot.slane %v224, 2
        %v226 = vadd.f32 %v224, %v225
        %v227 = vrot.slane %v226, 1
        %v228 = vadd.f32 %v226, %v227
        %v229 = vadd.f32 %v205, %v207
        %v230 = vrot.slane %v229, 4
        %v231 = vadd.f32 %v229, %v230
        %v232 = vrot.slane %v231, 2
        %v233 = vadd.f32 %v231, %v232
        %v234 = vrot.slane %v233, 1
        %v235 = vadd.f32 %v233, %v234
        %v236 = vrcp.pop 16.0
        %v237 = vmul.f32 %v228, %v236
        %v238 = vmul.f32 %v235, %v236
        %vm239 = vcmask 1040384
        %v240 = vsel %vm239, %v214, %v237
        %v241 = vsel %vm239, %v221, %v238
        %v242 = vlaneseq
        %v243 = vand.u32 %v242, 127
        %v244 = vadd.s32 %v243, 128
        %vm245 = vcmp.lt.s32.totalorder %v243, 0
        %v246 = vsub.s32 0, %v243
        %v247 = vsel %vm245, %v246, %v243
        %v248 = vshrl.u32 %v247, 4
        %v249 = vand.u32 %v247, 15
        %v250 = vsub.s32 0, %v249
        %v251 = vsel %vm245, %v250, %v249
        %vm252 = vcmp.lt.s32.totalorder %v244, 0
        %v253 = vsub.s32 0, %v244
        %v254 = vsel %vm252, %v253, %v244
        %v255 = vshrl.u32 %v254, 4
        %v256 = vand.u32 %v254, 15
        %v257 = vsub.s32 0, %v256
        %v258 = vsel %vm252, %v257, %v256
        %vm259 = vcmp.ne.s32.totalorder %v251, 0
        %vm260 = vcmp.ne.s32.totalorder %v258, 0
        %vm261 = vcmp.lt.s32.totalorder %v251, 0
        %vm262 = vcmp.lt.s32.totalorder %v258, 0
        %vm263 = vmand %vm261, %vm259
        %vm264 = vmand %vm262, %vm260
        %v265 = vadd.s32 %v251, 16
        %v266 = vadd.s32 %v258, 16
        %v267 = vsel %vm263, %v265, %v251
        %v268 = vsel %vm264, %v266, %v258
        %vm269 = vcmp.ne.s32.totalorder %v267, 0
        %vm270 = vcmp.ne.s32.totalorder %v268, 0
        %v271 = vsel %vm269, 1, 0
        %v272 = vsel %vm270, 1, 0
        %v273 = vcvt.s32.f32 %v271
        %v274 = vcvt.s32.f32 %v272
        %vm275 = vcmp.ne.s32.totalorder %v267, 15
        %vm276 = vcmp.ne.s32.totalorder %v268, 15
        %v277 = vsel %vm275, 1, 0
        %v278 = vsel %vm276, 1, 0
        %v279 = vcvt.s32.f32 %v277
        %v280 = vcvt.s32.f32 %v278
        %vm281 = vcmp.ge.s32.totalorder %v243, 16
        %vm282 = vcmp.ge.s32.totalorder %v244, 16
        %v283 = vsel %vm281, 1, 0
        %v284 = vsel %vm282, 1, 0
        %v285 = vcvt.s32.f32 %v283
        %v286 = vcvt.s32.f32 %v284
        %vm287 = vcmp.lt.s32.totalorder %v243, 240
        %vm288 = vcmp.lt.s32.totalorder %v244, 240
        %v289 = vsel %vm287, 1, 0
        %v290 = vsel %vm288, 1, 0
        %v291 = vcvt.s32.f32 %v289
        %v292 = vcvt.s32.f32 %v290
        %293 = vrot.lane.b32.xlu0 %v240, 1
        %v294 = vpop.permute.xlu0 %293
        %295 = vrot.lane.b32.xlu0 %v241, 1
        %v296 = vpop.permute.xlu0 %295
        %vm297 = vcmp.lt.s32.totalorder %v243, 1
        %v298 = vsel %vm297, %v294, %v296
        %v299 = vsel %vm297, %v296, %v294
        %v300 = vmul.f32 %v299, %v273
        %v301 = vmul.f32 %v298, %v274
        %302 = vrot.lane.b32.xlu0 %v240, 127
        %v303 = vpop.permute.xlu0 %302
        %304 = vrot.lane.b32.xlu0 %v241, 127
        %v305 = vpop.permute.xlu0 %304
        %vm306 = vcmp.lt.s32.totalorder %v243, 127
        %v307 = vsel %vm306, %v303, %v305
        %v308 = vsel %vm306, %v305, %v303
        %v309 = vmul.f32 %v307, %v279
        %v310 = vmul.f32 %v308, %v280
        %s311 = sld [smem:[#allocation7 + $0x3]]
        %v312 = vstv %s311
        %v313 = vmul.f32 %v300, %v312
        %v314 = vmul.f32 %v301, %v312
        %s315 = sld [smem:[#allocation7 + $0x83]]
        %v316 = vstv %s315
        %v317 = vmul.f32 %v300, %v316
        %v318 = vmul.f32 %v301, %v316
        %v321 = vrot.slane %v317, 1
        %v322 = vrot.slane %v318, 1
        %v325 = vadd.f32 %v313, %v321
        %v326 = vadd.f32 %v314, %v322
        %s327 = sld [smem:[#allocation7 + $0x4]]
        %v328 = vstv %s327
        %v329 = vmul.f32 %v240, %v328
        %v330 = vmul.f32 %v241, %v328
        %s331 = sld [smem:[#allocation7 + $0x84]]
        %v332 = vstv %s331
        %v333 = vmul.f32 %v240, %v332
        %v334 = vmul.f32 %v241, %v332
        %v337 = vrot.slane %v333, 1
        %v338 = vrot.slane %v334, 1
        %v341 = vadd.f32 %v329, %v337
        %v342 = vadd.f32 %v330, %v338
        %v343 = vadd.f32 %v325, %v341
        %v344 = vadd.f32 %v326, %v342
        %s345 = sld [smem:[#allocation7 + $0x5]]
        %v346 = vstv %s345
        %v347 = vmul.f32 %v309, %v346
        %v348 = vmul.f32 %v310, %v346
        %s349 = sld [smem:[#allocation7 + $0x85]]
        %v350 = vstv %s349
        %v351 = vmul.f32 %v309, %v350
        %v352 = vmul.f32 %v310, %v350
        %v355 = vrot.slane %v351, 1
        %v356 = vrot.slane %v352, 1
        %v359 = vadd.f32 %v347, %v355
        %v360 = vadd.f32 %v348, %v356
        %v361 = vadd.f32 %v343, %v359
        %v362 = vadd.f32 %v344, %v360
        %363 = vrot.lane.b32.xlu0 %v300, 16
        %v364 = vpop.permute.xlu0 %363
        %365 = vrot.lane.b32.xlu0 %v301, 16
        %v366 = vpop.permute.xlu0 %365
        %vm367 = vcmp.lt.s32.totalorder %v243, 16
        %v368 = vsel %vm367, %v364, %v366
        %v369 = vsel %vm367, %v366, %v364
        %s370 = sld [smem:[#allocation7]]
        %v371 = vstv %s370
        %v372 = vmul.f32 %v369, %v371
        %v373 = vmul.f32 %v368, %v371
        %s374 = sld [smem:[#allocation7 + $0x80]]
        %v375 = vstv %s374
        %v376 = vmul.f32 %v369, %v375
        %v377 = vmul.f32 %v368, %v375
        %v380 = vrot.slane %v376, 1
        %v381 = vrot.slane %v377, 1
        %v384 = vadd.f32 %v372, %v380
        %v385 = vadd.f32 %v373, %v381
        %386 = vrot.lane.b32.xlu0 %v240, 16
        %v387 = vpop.permute.xlu0 %386
        %388 = vrot.lane.b32.xlu0 %v241, 16
        %v389 = vpop.permute.xlu0 %388
        %v390 = vsel %vm367, %v387, %v389
        %v391 = vsel %vm367, %v389, %v387
        %s392 = sld [smem:[#allocation7 + $0x1]]
        %v393 = vstv %s392
        %v394 = vmul.f32 %v391, %v393
        %v395 = vmul.f32 %v390, %v393
        %s396 = sld [smem:[#allocation7 + $0x81]]
        %v397 = vstv %s396
        %v398 = vmul.f32 %v391, %v397
        %v399 = vmul.f32 %v390, %v397
        %v402 = vrot.slane %v398, 1
        %v403 = vrot.slane %v399, 1
        %v406 = vadd.f32 %v394, %v402
        %v407 = vadd.f32 %v395, %v403
        %v408 = vadd.f32 %v384, %v406
        %v409 = vadd.f32 %v385, %v407
        %410 = vrot.lane.b32.xlu0 %v309, 16
        %v411 = vpop.permute.xlu0 %410
        %412 = vrot.lane.b32.xlu0 %v310, 16
        %v413 = vpop.permute.xlu0 %412
        %v414 = vsel %vm367, %v411, %v413
        %v415 = vsel %vm367, %v413, %v411
        %s416 = sld [smem:[#allocation7 + $0x2]]
        %v417 = vstv %s416
        %v418 = vmul.f32 %v415, %v417
        %v419 = vmul.f32 %v414, %v417
        %s420 = sld [smem:[#allocation7 + $0x82]]
        %v421 = vstv %s420
        %v422 = vmul.f32 %v415, %v421
        %v423 = vmul.f32 %v414, %v421
        %v426 = vrot.slane %v422, 1
        %v427 = vrot.slane %v423, 1
        %v430 = vadd.f32 %v418, %v426
        %v431 = vadd.f32 %v419, %v427
        %v432 = vadd.f32 %v408, %v430
        %v433 = vadd.f32 %v409, %v431
        %v434 = vmul.f32 %v285, %v432
        %v435 = vmul.f32 %v286, %v433
        %v436 = vadd.f32 %v361, %v434
        %v437 = vadd.f32 %v362, %v435
        %438 = vrot.lane.b32.xlu0 %v300, 112
        %v439 = vpop.permute.xlu0 %438
        %440 = vrot.lane.b32.xlu0 %v301, 112
        %v441 = vpop.permute.xlu0 %440
        %vm442 = vcmp.lt.s32.totalorder %v243, 112
        %v443 = vsel %vm442, %v439, %v441
        %v444 = vsel %vm442, %v441, %v439
        %s445 = sld [smem:[#allocation7 + $0x6]]
        %v446 = vstv %s445
        %v447 = vmul.f32 %v443, %v446
        %v448 = vmul.f32 %v444, %v446
        %s449 = sld [smem:[#allocation7 + $0x86]]
        %v450 = vstv %s449
        %v451 = vmul.f32 %v443, %v450
        %v452 = vmul.f32 %v444, %v450
        %v455 = vrot.slane %v451, 1
        %v456 = vrot.slane %v452, 1
        %v459 = vadd.f32 %v447, %v455
        %v460 = vadd.f32 %v448, %v456
        %461 = vrot.lane.b32.xlu0 %v240, 112
        %v462 = vpop.permute.xlu0 %461
        %463 = vrot.lane.b32.xlu0 %v241, 112
        %v464 = vpop.permute.xlu0 %463
        %v465 = vsel %vm442, %v462, %v464
        %v466 = vsel %vm442, %v464, %v462
        %s467 = sld [smem:[#allocation7 + $0x7]]
        %v468 = vstv %s467
        %v469 = vmul.f32 %v465, %v468
        %v470 = vmul.f32 %v466, %v468
        %s471 = sld [smem:[#allocation7 + $0x87]]
        %v472 = vstv %s471
        %v473 = vmul.f32 %v465, %v472
        %v474 = vmul.f32 %v466, %v472
        %v477 = vrot.slane %v473, 1
        %v478 = vrot.slane %v474, 1
        %v481 = vadd.f32 %v469, %v477
        %v482 = vadd.f32 %v470, %v478
        %v483 = vadd.f32 %v459, %v481
        %v484 = vadd.f32 %v460, %v482
        %485 = vrot.lane.b32.xlu0 %v309, 112
        %v486 = vpop.permute.xlu0 %485
        %487 = vrot.lane.b32.xlu0 %v310, 112
        %v488 = vpop.permute.xlu0 %487
        %v489 = vsel %vm442, %v486, %v488
        %v490 = vsel %vm442, %v488, %v486
        %s491 = sld [smem:[#allocation7 + $0x8]]
        %v492 = vstv %s491
        %v493 = vmul.f32 %v489, %v492
        %v494 = vmul.f32 %v490, %v492
        %s495 = sld [smem:[#allocation7 + $0x88]]
        %v496 = vstv %s495
        %v497 = vmul.f32 %v489, %v496
        %v498 = vmul.f32 %v490, %v496
        %v501 = vrot.slane %v497, 1
        %v502 = vrot.slane %v498, 1
        %v505 = vadd.f32 %v493, %v501
        %v506 = vadd.f32 %v494, %v502
        %v507 = vadd.f32 %v483, %v505
        %v508 = vadd.f32 %v484, %v506
        %v509 = vmul.f32 %v291, %v507
        %v510 = vmul.f32 %v292, %v508
        %v511 = vadd.f32 %v436, %v509
        %v512 = vadd.f32 %v437, %v510
        %s513 = sld [smem:[#allocation2]]
        %v514 = vstv %s513
        %v515 = vadd.f32 %v511, %v514
        %v516 = vadd.f32 %v512, %v514
        %v517 = vmax.f32 %v515, 0.0
        %v518 = vmax.f32 %v516, 0.0
        %v519 = vxor.u32 %v517, 2147483648
        %v520 = vxor.u32 %v518, 2147483648
        %v521 = vmul.f32 %v519, 1.442695
        %v522 = vpow.pop %v521
        %v523 = vmul.f32 %v520, 1.442695
        %v524 = vpow.pop %v523
        %v525 = vadd.f32 %v522, 1.0
        %v526 = vadd.f32 %v524, 1.0
        %v527 = vrcp.pop %v525
        %v528 = vmul.f32 1.0, %v527
        %v529 = vrcp.pop %v526
        %v530 = vmul.f32 1.0, %v529
        %v531 = vlaneseq
        %v532 = vshrl.u32 %v531, 7
        %v533 = vsub.s32 0, %v532
        %v534 = vrot.slane %v528, %v533
        %v535 = vlaneseq
        %v536 = vshrl.u32 %v535, 7
        %v537 = vsub.s32 0, %v536
        %v538 = vrot.slane %v530, %v537
        %v539 = vmul.f32 %v204, %v534
        %v540 = vmul.f32 %v205, %v538
        %v541 = vmul.f32 %v206, %v534
        %v542 = vmul.f32 %v207, %v538
        %543 = vst [vmem:[%s203] sm:$0xff] %v539
        %544 = vst [vmem:[%s203 + $0x8] sm:$0xff] %v540
        %545 = vst [vmem:[%s203 + $0x10] sm:$0xff] %v541
        %546 = vst [vmem:[%s203 + $0x18] sm:$0xff] %v542
        %s547 = sand.u32 %s98, 1
        %s548 = scalar_lea.sflag [#allocation5], %s547
        %s549 = sand.u32 %s98, 1
        %s550 = smul.addr %s549, 32
        %s551 = scalar_lea.vmem [#allocation8], %s550
        // Predicated region
        $region41: #{tpu_custom_call.1} parent=31 // pred_check
          %p552 = pneg %p108
        $region42: #{tpu_custom_call.1} parent=31 // pred_check_branch
          %554 = sbr.rel (%p552) target = $region44
        $region43: #{tpu_custom_call.1} parent=31 // pred_region
          %s556 = ssub.s32 512, 512
          %557 = vsyncadd %s548, %s556
          %s558 = smul.addr %s22, 4
          %s559 = smul.addr %s558, 128
          %s560 = scalar_lea.hbm %s3, %s559
          %s561 = sshll.u32 %s551, 4
          %s562 = int_to_ptr.vmem [resolvable:$true] %s561
          %567 = dma.vmem_to_hbm [thread:$0]  %s562, 512, %s560, %s548, 256, 256, 16
        $region44: #{tpu_custom_call.1} parent=31 // pred_fallthru
          _
      $region32: #{tpu_custom_call.1} parent=5 // pred_fallthru
        _
      %p568 = scmp.le.s32.totalorder 2, %s17
      // Predicated region
      $region45: #{tpu_custom_call.1} parent=5 // pred_check
        %p569 = pneg %p568
      $region46: #{tpu_custom_call.1} parent=5 // pred_check_branch
        %571 = sbr.rel (%p569) target = $region48
      $region47: #{tpu_custom_call.1} parent=5 // pred_region
        %s572 = ssub.s32 %s17, 2
        // Predicated region
        $region49: #{tpu_custom_call.1} parent=47 // pred_check
          %p573 = pneg %p114
        $region50: #{tpu_custom_call.1} parent=47 // pred_check_branch
          %575 = sbr.rel (%p573) target = $region52
        $region51: #{tpu_custom_call.1} parent=47 // pred_region
          %s576 = sand.u32 %s99, 1
          %s577 = scalar_lea.sflag [#allocation5], %s576
          %s578 = sand.u32 %s99, 1
          %s579 = smul.addr %s578, 32
          %s580 = scalar_lea.vmem [#allocation8], %s579
          %581 = dma.done %s577, 512
        $region52: #{tpu_custom_call.1} parent=47 // pred_fallthru
          _
      $region48: #{tpu_custom_call.1} parent=5 // pred_fallthru
        _
    $region6: #{tpu_custom_call.1} parent=1 // loop_footer
      %s21 = sadd.s32 1, %s17
    $region7: #{tpu_custom_call.1} parent=1 // loop_footer_branch
      %16 = sbr.rel target = $region3
    $region8: #{tpu_custom_call.1} parent=1 // loop_exit
      _
    %582 = vsyncpa [#allocation4], 1
    %s583 = scalar_lea.sflag [#allocation4], 1
    %584 = vsyncpa %s583, 1
    %585 = vsyncpa [#allocation5], 1
    %s586 = scalar_lea.sflag [#allocation5], 1
    %587 = vsyncpa %s586, 1
    %588 = vsyncpa [#allocation6], 1
    %s589 = scalar_lea.sflag [#allocation6], 1
    %590 = vsyncpa %s589, 1

</llo_original>
